<compile_context>
chip_gen: v7x
topology: tpu7x:2x2x1
jax: 0.10.0
libtpu: 0.0.40
codegen_flags: <defaults>
</compile_context>

<pallas_src>
import jax
import jax.numpy as jnp
from jax.experimental import pallas as pl
from jax.experimental.pallas import tpu as pltpu


def attention_kernel(z_ref, w1_ref, b1_ref, w2_ref, out_ref, beta_ref):
    # z_ref: (TB, N, D), w1_ref: (D, H), b1_ref: (1, H), w2_ref: (1, H)
    # out_ref: (TB, D), beta_ref: (TB, N)
    z = z_ref[...].astype(jnp.float32)                        # (TB, N, D)
    tb, n, d = z.shape

    # One big MXU matmul over all folded batches: (TB*N, D) @ (D, H)
    zf = z.reshape(tb * n, d)
    h = jnp.tanh(
        jnp.dot(zf, w1_ref[...], preferred_element_type=jnp.float32) + b1_ref[...]
    )                                                         # (TB*N, H)
    h = h.reshape(tb, n, -1)                                  # (TB, N, H)

    # Second projection has a 1-wide output -> do it on the VPU/XLU, not the MXU.
    logits = jnp.sum(h * w2_ref[...], axis=-1)                # (TB, N)

    # Softmax over the seq axis (dim=1 of the original (B, N, 1) logits), f32.
    m = jnp.max(logits, axis=-1, keepdims=True)               # (TB, 1)
    e = jnp.exp(logits - m)                                   # (TB, N)
    beta = e / jnp.sum(e, axis=-1, keepdims=True)             # (TB, N)
    beta_ref[...] = beta.astype(beta_ref.dtype)

    # Weighted sum over seq: (TB, D)
    out_ref[...] = jnp.sum(beta[:, :, None] * z, axis=1).astype(out_ref.dtype)


def _pick_batch_block(B, N, D, itemsize, vmem_budget_bytes=12 * 1024 * 1024):
    """Largest divisor of B whose double-buffered z block fits a conservative
    cross-generation VMEM budget (safe for v5e 16 MiB default scoped and v7x 64 MiB physical)."""
    cap = max(1, vmem_budget_bytes // (2 * N * D * itemsize))
    if B <= cap:
        return B
    best = 1
    for t in range(1, cap + 1):
        if B % t == 0:
            best = t
    return best


def attention_forward(z, w1, b1, w2):
    B, N, D = z.shape
    H = w1.shape[1]
    w2_row = w2.reshape(1, H)    # lay the (H, 1) weight out as a row for the VPU reduce
    b1_row = b1.reshape(1, H)

    TB = _pick_batch_block(B, N, D, z.dtype.itemsize)
    grid = (B // TB,)

    out_shapes = (
        jax.ShapeDtypeStruct((B, D), z.dtype),   # (beta * z).sum(1)
        jax.ShapeDtypeStruct((B, N), z.dtype),   # beta, lane-dense (reshaped below)
    )
    out, beta = pl.pallas_call(
        attention_kernel,
        out_shape=out_shapes,
        grid_spec=pltpu.PrefetchScalarGridSpec(
            num_scalar_prefetch=0,
            grid=grid,
            in_specs=[
                pl.BlockSpec((TB, N, D), lambda b: (b, 0, 0)),
                pl.BlockSpec((D, H), lambda b: (0, 0)),
                pl.BlockSpec((1, H), lambda b: (0, 0)),
                pl.BlockSpec((1, H), lambda b: (0, 0)),
            ],
            out_specs=[
                pl.BlockSpec((TB, D), lambda b: (b, 0)),
                pl.BlockSpec((TB, N), lambda b: (b, 0)),
            ],
        ),
        compiler_params=pltpu.CompilerParams(
            dimension_semantics=("parallel",),
            vmem_limit_bytes=32 * 1024 * 1024,
        ),
    )(z, w1, b1_row, w2_row)
    # Match the PyTorch module's beta shape (B, N, 1).
    return out, beta.reshape(B, N, 1)


def attention_ref(z, w1, b1, w2):
    # pure-JAX reference matching the PyTorch forward
    w = jnp.tanh(z @ w1 + b1) @ w2                # (B, N, 1)
    beta = jax.nn.softmax(w, axis=1)              # softmax over dim=1
    return (beta * z).sum(axis=1), beta


if __name__ == "__main__":
    B, N, D, H = 2, 8, 32, 16   # batch=2, seq=8, in_size=32, hidden_size=16

    key = jax.random.PRNGKey(0)
    kz, kw1, kb1, kw2 = jax.random.split(key, 4)

    z = jax.random.normal(kz, (B, N, D), dtype=jnp.float32)
    # Deterministic parameter init (PyTorch Linear-style uniform bounds).
    bound1 = 1.0 / (D ** 0.5)
    w1 = jax.random.uniform(kw1, (D, H), jnp.float32, -bound1, bound1)
    b1 = jax.random.uniform(kb1, (1, H), jnp.float32, -bound1, bound1)
    bound2 = 1.0 / (H ** 0.5)
    w2 = jax.random.uniform(kw2, (H, 1), jnp.float32, -bound2, bound2)

    out, beta = attention_forward(z, w1, b1, w2)
    out = jax.block_until_ready(out)
    beta = jax.block_until_ready(beta)

    out_ref, beta_ref = attention_ref(z, w1, b1, w2)
    assert out.shape == (B, D) and beta.shape == (B, N, 1)
    assert jnp.allclose(out, out_ref, atol=1e-5, rtol=1e-5)
    assert jnp.allclose(beta, beta_ref, atol=1e-5, rtol=1e-5)

    print("KERNEL_OK")
</pallas_src>

<mosaic_0001>
module attributes {stable_mosaic.version = 11 : i64} {
  func.func @attention_kernel(%arg0: i32, %arg1: memref<2x8x32xf32, #tpu.memory_space<vmem>>, %arg2: memref<32x16xf32, #tpu.memory_space<vmem>>, %arg3: memref<1x16xf32, #tpu.memory_space<vmem>>, %arg4: memref<1x16xf32, #tpu.memory_space<vmem>>, %arg5: memref<2x32xf32, #tpu.memory_space<vmem>>, %arg6: memref<2x8xf32, #tpu.memory_space<vmem>>) attributes {dimension_semantics = [#tpu.dimension_semantics<parallel>], iteration_bounds = array<i64: 1>, scalar_prefetch = 0 : i64, scratch_operands = 0 : i64, tpu.core_type = #tpu.core_type<tc>, window_params = [{transform_indices = @transform_0, window_bounds = array<i64: 2, 8, 32>}, {pipeline_mode = #tpu.pipeline_mode<synchronous>, transform_indices = @transform_1, window_bounds = array<i64: 32, 16>}, {pipeline_mode = #tpu.pipeline_mode<synchronous>, transform_indices = @transform_2, window_bounds = array<i64: 1, 16>}, {pipeline_mode = #tpu.pipeline_mode<synchronous>, transform_indices = @transform_3, window_bounds = array<i64: 1, 16>}, {transform_indices = @transform_4, window_bounds = array<i64: 2, 32>}, {transform_indices = @transform_5, window_bounds = array<i64: 2, 8>}]} {
    %c0 = arith.constant 0 : index
    %c0_0 = arith.constant 0 : index
    %c0_1 = arith.constant 0 : index
    %0 = vector.load %arg1[%c0, %c0_0, %c0_1] : memref<2x8x32xf32, #tpu.memory_space<vmem>>, vector<2x8x32xf32>
    %1 = vector.shape_cast %0 : vector<2x8x32xf32> to vector<16x32xf32>
    %c0_2 = arith.constant 0 : index
    %c0_3 = arith.constant 0 : index
    %2 = vector.load %arg2[%c0_2, %c0_3] : memref<32x16xf32, #tpu.memory_space<vmem>>, vector<32x16xf32>
    %cst = arith.constant dense<0.000000e+00> : vector<16x16xf32>
    %3 = tpu.matmul %1, %2, %cst {dimension_numbers = #tpu.dot_dimension_numbers<[1], [0], [0], [1], [0, 0, 1, 1], [], []>} : vector<16x32xf32>, vector<32x16xf32>, vector<16x16xf32> -> vector<16x16xf32>
    %c0_4 = arith.constant 0 : index
    %c0_5 = arith.constant 0 : index
    %4 = vector.load %arg3[%c0_4, %c0_5] : memref<1x16xf32, #tpu.memory_space<vmem>>, vector<1x16xf32>
    %5 = vector.broadcast %4 : vector<1x16xf32> to vector<16x16xf32>
    %6 = arith.addf %3, %5 : vector<16x16xf32>
    %7 = math.tanh %6 : vector<16x16xf32>
    %8 = vector.shape_cast %7 : vector<16x16xf32> to vector<2x8x16xf32>
    %c0_6 = arith.constant 0 : index
    %c0_7 = arith.constant 0 : index
    %9 = vector.load %arg4[%c0_6, %c0_7] : memref<1x16xf32, #tpu.memory_space<vmem>>, vector<1x16xf32>
    %10 = vector.shape_cast %9 : vector<1x16xf32> to vector<1x1x16xf32>
    %11 = vector.broadcast %10 : vector<1x1x16xf32> to vector<2x8x16xf32>
    %12 = arith.mulf %8, %11 : vector<2x8x16xf32>
    %cst_8 = arith.constant dense<0.000000e+00> : vector<2x8xf32>
    %13 = vector.multi_reduction <add>, %12, %cst_8 [2] : vector<2x8x16xf32> to vector<2x8xf32>
    %cst_9 = arith.constant dense<0xFF800000> : vector<2xf32>
    %14 = vector.multi_reduction <maximumf>, %13, %cst_9 [1] : vector<2x8xf32> to vector<2xf32>
    %15 = vector.shape_cast %14 : vector<2xf32> to vector<2x1xf32>
    %16 = vector.broadcast %15 : vector<2x1xf32> to vector<2x8xf32>
    %17 = arith.subf %13, %16 : vector<2x8xf32>
    %18 = math.exp %17 : vector<2x8xf32>
    %cst_10 = arith.constant dense<0.000000e+00> : vector<2xf32>
    %19 = vector.multi_reduction <add>, %18, %cst_10 [1] : vector<2x8xf32> to vector<2xf32>
    %20 = vector.shape_cast %19 : vector<2xf32> to vector<2x1xf32>
    %21 = vector.broadcast %20 : vector<2x1xf32> to vector<2x8xf32>
    %22 = arith.divf %18, %21 : vector<2x8xf32>
    %c0_11 = arith.constant 0 : index
    %c0_12 = arith.constant 0 : index
    %23 = vector.load %arg6[%c0_11, %c0_12] : memref<2x8xf32, #tpu.memory_space<vmem>>, vector<2x8xf32>
    tpu.vector_store %arg6[%c0_11, %c0_12], %22 {strides = array<i32>} : memref<2x8xf32, #tpu.memory_space<vmem>>, vector<2x8xf32>,
    %24 = vector.shape_cast %22 : vector<2x8xf32> to vector<2x8x1xf32>
    %25 = vector.broadcast %24 : vector<2x8x1xf32> to vector<2x8x32xf32>
    %26 = arith.mulf %25, %0 : vector<2x8x32xf32>
    %cst_13 = arith.constant dense<0.000000e+00> : vector<2x32xf32>
    %27 = vector.multi_reduction <add>, %26, %cst_13 [1] : vector<2x8x32xf32> to vector<2x32xf32>
    %c0_14 = arith.constant 0 : index
    %c0_15 = arith.constant 0 : index
    %28 = vector.load %arg5[%c0_14, %c0_15] : memref<2x32xf32, #tpu.memory_space<vmem>>, vector<2x32xf32>
    tpu.vector_store %arg5[%c0_14, %c0_15], %27 {strides = array<i32>} : memref<2x32xf32, #tpu.memory_space<vmem>>, vector<2x32xf32>,
    return
  }
  func.func @transform_0(%arg0: i32) -> (i32, i32, i32) {
    %c0_i32 = arith.constant 0 : i32
    %c0_i32_0 = arith.constant 0 : i32
    %c0_i32_1 = arith.constant 0 : i32
    return %arg0, %c0_i32, %c0_i32_0 : i32, i32, i32
  }
  func.func @transform_1(%arg0: i32) -> (i32, i32) {
    %c0_i32 = arith.constant 0 : i32
    %c0_i32_0 = arith.constant 0 : i32
    %c0_i32_1 = arith.constant 0 : i32
    return %c0_i32, %c0_i32_0 : i32, i32
  }
  func.func @transform_2(%arg0: i32) -> (i32, i32) {
    %c0_i32 = arith.constant 0 : i32
    %c0_i32_0 = arith.constant 0 : i32
    %c0_i32_1 = arith.constant 0 : i32
    return %c0_i32, %c0_i32_0 : i32, i32
  }
  func.func @transform_3(%arg0: i32) -> (i32, i32) {
    %c0_i32 = arith.constant 0 : i32
    %c0_i32_0 = arith.constant 0 : i32
    %c0_i32_1 = arith.constant 0 : i32
    return %c0_i32, %c0_i32_0 : i32, i32
  }
  func.func @transform_4(%arg0: i32) -> (i32, i32) {
    %c0_i32 = arith.constant 0 : i32
    %c0_i32_0 = arith.constant 0 : i32
    return %arg0, %c0_i32 : i32, i32
  }
  func.func @transform_5(%arg0: i32) -> (i32, i32) {
    %c0_i32 = arith.constant 0 : i32
    %c0_i32_0 = arith.constant 0 : i32
    return %arg0, %c0_i32 : i32, i32
  }
}

</mosaic_0001>

<llo_original>
// kernel: tpu_custom_call.1
$region0: #{tpu_custom_call.1}
  #allocation0 [shape = 'u32[]', space=smem, size = 0x4, offset = 0x4, fixed_abs, tag = 'smem constant byte address 0x4 - core index']
  #allocation1 [shape = 'u32[144,128]{1,0:T(1,128)}', space=vmem, size = 0x12000, scoped, tag = 'internal scratch']
  %s0 = inlined_call_operand.vmem [shape: f32[2,8,32], index: 0, kind: input, shape index: {}]
  %s1 = inlined_call_operand.vmem [shape: f32[32,16], index: 1, kind: input, shape index: {}]
  %s2 = inlined_call_operand.vmem [shape: f32[1,16], index: 2, kind: input, shape index: {}]
  %s3 = inlined_call_operand.vmem [shape: f32[1,16], index: 3, kind: input, shape index: {}]
  %s4 = inlined_call_operand.hbm [shape: f32[2,32], index: 4, kind: output, shape index: {0}]
  %s5 = inlined_call_operand.hbm [shape: f32[2,8], index: 5, kind: output, shape index: {1}]
  %6 = xla_tuple %s4, %s5
  %s7 = sld [smem:[#allocation0]]
  $region34: #{tpu_custom_call.1} parent=0
    _
  %s9 = ssub.s32 1, %s7
  %s10 = scalar_select 0, %s9, %s7
  $region1: #{tpu_custom_call.1} parent=0
    #allocation2 [shape = 'u8[1024]{0}', space=vmem, size = 0x400, scoped, tag = 'output window, operand 0, single buffered']
    #allocation3 [shape = 's32[1]{0}', space=sflag, size = 0x4, scoped, tag = 'scoped memory for tpu_custom_call.1']
    #allocation4 [shape = 'u8[1024]{0}', space=vmem, size = 0x400, scoped, tag = 'output window, operand 1, single buffered']
    #allocation5 [shape = 's32[1]{0}', space=sflag, size = 0x4, scoped, tag = 'scoped memory for tpu_custom_call.1']
    %11 = vsyncpa [#allocation3], 0
    %12 = vsyncpa [#allocation5], 0
    // Predicated region
    $region2: #{tpu_custom_call.1} parent=1 // pred_check
      _
    $region3: #{tpu_custom_call.1} parent=1 // pred_check_branch
      %14 = sbr.rel (0) target = $region5
    $region4: #{tpu_custom_call.1} parent=1 // pred_region
      _
    $region5: #{tpu_custom_call.1} parent=1 // pred_fallthru
      _
    // Predicated region
    $region6: #{tpu_custom_call.1} parent=1 // pred_check
      _
    $region7: #{tpu_custom_call.1} parent=1 // pred_check_branch
      %16 = sbr.rel (0) target = $region9
    $region8: #{tpu_custom_call.1} parent=1 // pred_region
      _
    $region9: #{tpu_custom_call.1} parent=1 // pred_fallthru
      _
    // Predicated region
    $region10: #{tpu_custom_call.1} parent=1 // pred_check
      _
    $region11: #{tpu_custom_call.1} parent=1 // pred_check_branch
      %18 = sbr.rel (0) target = $region13
    $region12: #{tpu_custom_call.1} parent=1 // pred_region
      _
    $region13: #{tpu_custom_call.1} parent=1 // pred_fallthru
      _
    // Predicated region
    $region14: #{tpu_custom_call.1} parent=1 // pred_check
      _
    $region15: #{tpu_custom_call.1} parent=1 // pred_check_branch
      %20 = sbr.rel (0) target = $region17
    $region16: #{tpu_custom_call.1} parent=1 // pred_region
      _
    $region17: #{tpu_custom_call.1} parent=1 // pred_fallthru
      _
    %v21 = vld [vmem:[%s0] sm:$0xff]
    %v22 = vld [vmem:[%s0 + $0x8] sm:$0xff]
    %v23 = vld [vmem:[%s1] sm:$0xff]
    %v24 = vld [vmem:[%s1 + $0x8] sm:$0xff]
    %v25 = vld [vmem:[%s1 + $0x10] sm:$0xff]
    %v26 = vld [vmem:[%s1 + $0x18] sm:$0xff]
    %v27 = vld [vmem:[%s2] sm:$0x1]
    %v29 = vlaneseq
    %v30 = vshrl.u32 %v29, 7
    %v31 = vsub.s32 0, %v30
    %v32 = vrot.slane %v27, %v31
    %vm34 = vcmask 261120
    %v36 = vsel %vm34, %v21, 0
    %v39 = vsel %vm34, %v22, 0
    %41 = vmatprep.subr.mxu0 0.0
    %42 = vmatpush1.msra.mxu0 %v23
    %43 = vmatprep.subr.mxu0 0.0
    %44 = vmatpush1.msra.mxu0 %v24
    %45 = vmatprep.subr.mxu0 0.0
    %46 = vmatpush1.msra.mxu0 %v25
    %47 = vmatprep.subr.mxu0 0.0
    %48 = vmatpush1.msra.mxu0 %v26
    %49 = vmatprep.subr.mxu0 0.0
    %50 = vmatpush1.msra.mxu0 0.0
    %51 = vmatprep.subr.mxu0 0.0
    %52 = vmatpush1.msra.mxu0 0.0
    %53 = vmatprep.subr.mxu0 0.0
    %54 = vmatpush1.msra.mxu0 0.0
    %55 = vmatprep.subr.mxu0 0.0
    %56 = vmatpush1.msra.mxu0 0.0
    %57 = vmatprep.subr.mxu0 0.0
    %58 = vmatpush1.msra.mxu0 0.0
    %59 = vmatprep.subr.mxu0 0.0
    %60 = vmatpush1.msra.mxu0 0.0
    %61 = vmatprep.subr.mxu0 0.0
    %62 = vmatpush1.msra.mxu0 0.0
    %63 = vmatprep.subr.mxu0 0.0
    %64 = vmatpush1.msra.mxu0 0.0
    %65 = vmatprep.subr.mxu0 0.0
    %66 = vmatpush1.msra.mxu0 0.0
    %67 = vmatprep.subr.mxu0 0.0
    %68 = vmatpush1.msra.mxu0 0.0
    %69 = vmatprep.subr.mxu0 0.0
    %70 = vmatpush1.msra.mxu0 0.0
    %71 = vmatprep.subr.mxu0 0.0
    %72 = vmatpush1.msra.mxu0 0.0
    %73 = vmatprep.subr.mxu0 0.0
    %74 = vmatpush1.msra.mxu0 0.0
    %75 = vmatprep.subr.mxu0 0.0
    %76 = vmatpush1.msra.mxu0 0.0
    %77 = vmatprep.subr.mxu0 0.0
    %78 = vmatpush1.msra.mxu0 0.0
    %79 = vmatprep.subr.mxu0 0.0
    %80 = vmatpush1.msra.mxu0 0.0
    %81 = vmatprep.subr.mxu0 0.0
    %82 = vmatpush1.msra.mxu0 0.0
    %83 = vmatprep.subr.mxu0 0.0
    %84 = vmatpush1.msra.mxu0 0.0
    %85 = vmatprep.subr.mxu0 0.0
    %86 = vmatpush1.msra.mxu0 0.0
    %87 = vmatprep.subr.mxu0 0.0
    %88 = vmatpush1.msra.mxu0 0.0
    %89 = vmatprep.subr.mxu0 0.0
    %90 = vmatpush1.msra.mxu0 0.0
    %91 = vmatprep.subr.mxu0 0.0
    %92 = vmatpush1.msra.mxu0 0.0
    %93 = vmatprep.subr.mxu0 0.0
    %94 = vmatpush1.msra.mxu0 0.0
    %95 = vmatprep.subr.mxu0 0.0
    %96 = vmatpush1.msra.mxu0 0.0
    %97 = vmatprep.subr.mxu0 0.0
    %98 = vmatpush1.msra.mxu0 0.0
    %99 = vmatprep.subr.mxu0 0.0
    %100 = vmatpush1.msra.mxu0 0.0
    %101 = vmatprep.subr.mxu0 0.0
    %102 = vmatpush1.msra.mxu0 0.0
    %103 = vmatprep.subr.mxu0 0.0
    %104 = vmatpush1.msra.mxu0 0.0
    %105 = vmatprep.mubr.f32.mxu0 0.0
    %106 = vmatmul.mubr.f32.gmra.mrb[0].mxu0 %v36
    %v107 = vpop.f32.mrb[0].mxu0
    %v108 = vadd.f32 %v32, %v107
    %v109 = vpop.f32.mrb[0].mxu0
    %110 = vmatprep.mubr.f32.mxu0 0.0
    %111 = vmatmul.mubr.f32.gmra.mrb[0].mxu0 %v39
    %v112 = vpop.f32.mrb[0].mxu0
    %v113 = vadd.f32 %v32, %v112
    %v114 = vpop.f32.mrb[0].mxu0
    %115 = vdwg.mxu0
    %v116 = vtanh.pop %v108
    %v117 = vtanh.pop %v113
    %v118 = vld [vmem:[%s3] sm:$0x1]
    %v120 = vlaneseq
    %v121 = vshrl.u32 %v120, 7
    %v122 = vsub.s32 0, %v121
    %v123 = vrot.slane %v118, %v122
    %v125 = vmul.f32 %v116, %v123
    %v126 = vmul.f32 %v117, %v123
    %vm127 = vcmask 130048
    %v128 = vsel %vm127, %v125, 0.0
    %129 = vadd.xlane.f32.xlu0 %v128
    %v130 = vpop.xlane.xlu0 %129
    %v131 = vsel %vm127, %v126, 0.0
    %132 = vadd.xlane.f32.xlu0 %v131
    %v133 = vpop.xlane.xlu0 %132
    %v136 = vlaneseq
    %v137 = vand.u32 %v136, 127
    %v138 = vlaneseq
    %v139 = vshrl.u32 %v138, 7
    %v140 = vsub.s32 %v137, %v139
    %v141 = vrot.slane %v130, %v140
    %v142 = vlaneseq
    %v143 = vshrl.u32 %v142, 7
    %v144 = vsub.s32 %v137, %v143
    %v145 = vrot.slane %v133, %v144
    %vm146 = vcmask 1041409
    %v147 = vsel %vm146, %v145, %v141
    %vm149 = vcmask 58368
    %v150 = vsel %vm149, %v147, -inf
    %151 = vmax.xlane.f32.xlu0 %v150
    %v152 = vpop.xlane.xlu0 %151
    %v154 = vlaneseq
    %v155 = vshrl.u32 %v154, 7
    %v156 = vsub.s32 0, %v155
    %v157 = vrot.slane %v152, %v156
    %v158 = vlaneseq
    %v159 = vshrl.u32 %v158, 7
    %v160 = vsub.s32 1, %v159
    %v161 = vrot.slane %v152, %v160
    %v164 = vsub.f32 %v130, %v157
    %v165 = vsub.f32 %v133, %v161
    %v166 = vmul.f32 %v164, 1.442695
    %v167 = vpow.pop %v166
    %v168 = vmul.f32 %v165, 1.442695
    %v169 = vpow.pop %v168
    %172 = vset.pattern.permute.xlu0 0
    %173 = vperm.xlu0 %172, %v167
    %v174 = vpop.permute.xlu0 %173
    %175 = vset.pattern.permute.xlu0 0
    %176 = vperm.xlu0 %175, %v169
    %v177 = vpop.permute.xlu0 %176
    %v178 = vlaneseq
    %v179 = vshrl.u32 %v178, 7
    %v180 = vsub.s32 %v137, %v179
    %v181 = vrot.slane %v174, %v180
    %v182 = vlaneseq
    %v183 = vshrl.u32 %v182, 7
    %v184 = vsub.s32 %v137, %v183
    %v185 = vrot.slane %v177, %v184
    %v186 = vsel %vm146, %v185, %v181
    %v188 = vsel %vm149, %v186, 0.0
    %189 = vadd.xlane.f32.xlu0 %v188
    %v190 = vpop.xlane.xlu0 %189
    %v192 = vlaneseq
    %v193 = vshrl.u32 %v192, 7
    %v194 = vsub.s32 0, %v193
    %v195 = vrot.slane %v190, %v194
    %v196 = vlaneseq
    %v197 = vshrl.u32 %v196, 7
    %v198 = vsub.s32 1, %v197
    %v199 = vrot.slane %v190, %v198
    %v202 = vrcp.pop %v195
    %v203 = vmul.f32 %v167, %v202
    %v204 = vrcp.pop %v199
    %v205 = vmul.f32 %v169, %v204
    %208 = vset.pattern.permute.xlu0 0
    %209 = vperm.xlu0 %208, %v203
    %v210 = vpop.permute.xlu0 %209
    %211 = vset.pattern.permute.xlu0 0
    %212 = vperm.xlu0 %211, %v205
    %v213 = vpop.permute.xlu0 %212
    %v214 = vlaneseq
    %v215 = vshrl.u32 %v214, 7
    %v216 = vsub.s32 %v137, %v215
    %v217 = vrot.slane %v210, %v216
    %v218 = vlaneseq
    %v219 = vshrl.u32 %v218, 7
    %v220 = vsub.s32 %v137, %v219
    %v221 = vrot.slane %v213, %v220
    %v222 = vsel %vm146, %v221, %v217
    %224 = vst.msk [vmem:[#allocation4] sm:$0x3] %vm149, %v222
    %v227 = vmul.f32 %v210, %v21
    %v228 = vmul.f32 %v213, %v22
    %v229 = vsel %vm34, %v227, 0.0
    %v230 = vrot.slane %v229, 4
    %v231 = vadd.f32 %v229, %v230
    %v232 = vrot.slane %v231, 2
    %v233 = vadd.f32 %v231, %v232
    %v234 = vrot.slane %v233, 1
    %v235 = vadd.f32 %v233, %v234
    %v236 = vsel %vm34, %v228, 0.0
    %v237 = vrot.slane %v236, 4
    %v238 = vadd.f32 %v236, %v237
    %v239 = vrot.slane %v238, 2
    %v240 = vadd.f32 %v238, %v239
    %v241 = vrot.slane %v240, 1
    %v242 = vadd.f32 %v240, %v241
    %v245 = vsel %vm146, %v242, %v235
    %vm247 = vcmask 254976
    %248 = vst.msk [vmem:[#allocation2] sm:$0x3] %vm247, %v245
    // Predicated region
    $region18: #{tpu_custom_call.1} parent=1 // pred_check
      _
    $region19: #{tpu_custom_call.1} parent=1 // pred_check_branch
      %250 = sbr.rel (0) target = $region21
    $region20: #{tpu_custom_call.1} parent=1 // pred_region
      %s252 = ssub.s32 32, 32
      %253 = vsyncadd [#allocation3], %s252
      %s255 = sshll.u32 [#allocation2], 4
      %s256 = int_to_ptr.vmem [resolvable:$true] %s255
      %258 = dma.vmem_to_hbm [thread:$0]  %s256, 32, %s4, [#allocation3]
    $region21: #{tpu_custom_call.1} parent=1 // pred_fallthru
      _
    // Predicated region
    $region22: #{tpu_custom_call.1} parent=1 // pred_check
      _
    $region23: #{tpu_custom_call.1} parent=1 // pred_check_branch
      %260 = sbr.rel (0) target = $region25
    $region24: #{tpu_custom_call.1} parent=1 // pred_region
      %s262 = ssub.s32 32, 32
      %263 = vsyncadd [#allocation5], %s262
      %s265 = sshll.u32 [#allocation4], 4
      %s266 = int_to_ptr.vmem [resolvable:$true] %s265
      %268 = dma.vmem_to_hbm [thread:$0]  %s266, 32, %s5, [#allocation5]
    $region25: #{tpu_custom_call.1} parent=1 // pred_fallthru
      _
    // Predicated region
    $region26: #{tpu_custom_call.1} parent=1 // pred_check
      _
    $region27: #{tpu_custom_call.1} parent=1 // pred_check_branch
      %270 = sbr.rel (0) target = $region29
    $region28: #{tpu_custom_call.1} parent=1 // pred_region
      %271 = dma.done [#allocation3], 32
    $region29: #{tpu_custom_call.1} parent=1 // pred_fallthru
      _
    // Predicated region
    $region30: #{tpu_custom_call.1} parent=1 // pred_check
      _
    $region31: #{tpu_custom_call.1} parent=1 // pred_check_branch
      %273 = sbr.rel (0) target = $region33
    $region32: #{tpu_custom_call.1} parent=1 // pred_region
      %274 = dma.done [#allocation5], 32
    $region33: #{tpu_custom_call.1} parent=1 // pred_fallthru
      _
    %275 = vsyncpa [#allocation3], 1
    %276 = vsyncpa [#allocation5], 1

</llo_original>
